<compile_context>
chip_gen: v7x
topology: tpu7x:2x2x1
jax: 0.10.0
libtpu: 0.0.40
codegen_flags: <defaults>
</compile_context>

<pallas_src>
import functools
import numpy as np
import jax
import jax.numpy as jnp
from jax.experimental import pallas as pl
from jax.experimental.pallas import tpu as pltpu

_VMEM_LIMIT = 32 * 1024 * 1024      # fits v5e/v6e (128 MiB phys) and v7x (64 MiB phys)
_VMEM_BUDGET = 12 << 20             # target working set for double-buffered blocks


def _params():
    return pltpu.CompilerParams(dimension_semantics=("parallel",),
                                vmem_limit_bytes=_VMEM_LIMIT)


# ----------------------------------------------------------------------------
# Tile-size helpers (VMEM-budget / R aware, >=2 grid steps when possible)
# ----------------------------------------------------------------------------

def _row_tile(rows, num_bufs, itemsize=4, budget=_VMEM_BUDGET):
    """Sublane row tile for (rows, 128) elementwise kernels."""
    if rows <= 8:
        return rows
    max_tr = (rows // 8) * 8
    tr = budget // (num_bufs * 2 * 128 * itemsize)        # double-buffered blocks
    tr = max(8, min((tr // 8) * 8, max_tr))
    if -(-rows // tr) < 2 and rows >= 16:                  # v7x megacore: >=2 steps
        tr = min(max_tr, max(8, (((rows + 1) // 2 + 7) // 8) * 8))
    return tr


def _lane_tile(m, per_lane_bytes, cap, budget=_VMEM_BUDGET):
    """Lane (last-dim) tile in multiples of 128; >=2 grid steps when possible."""
    if m < 256:
        return m
    tm = min(cap, max(128, (budget // per_lane_bytes) // 128 * 128))
    tm = min(tm, (m // 128) * 128)
    if -(-m // tm) < 2:                                    # v7x megacore: >=2 steps
        tm = min((m // 128) * 128, max(128, (((m + 1) // 2 + 127) // 128) * 128))
    return tm


def _batch_tile(b, cap=8):
    """Divisor of b, capped, preferring >=2 grid steps."""
    divisors = [d for d in range(1, min(b, cap) + 1) if b % d == 0]
    tb = divisors[-1]
    if b > 1 and b // tb < 2:
        smaller = [d for d in divisors if b // d >= 2]
        if smaller:
            tb = smaller[-1]
    return tb


def _flatten_2d(h):
    """Lane-dense (rows, 128) view; pads (rare, size % 128 != 0) instead of one big block."""
    m = h.size
    flat = h.reshape(-1)
    pad = (-m) % 128
    if pad:
        flat = jnp.pad(flat, (0, pad))
    return flat.reshape((m + pad) // 128, 128)


def _unflatten(out2d, shape):
    n = int(np.prod(shape))
    return out2d.reshape(-1)[:n].reshape(shape)


# ----------------------------------------------------------------------------
# Elementwise reductions over the relation axis (sum / average / max / weighted)
# ----------------------------------------------------------------------------

def _reduce_kernel(*refs, op, num_rels):
    x_refs, o_ref = refs[:-1], refs[-1]
    if op == "max":
        acc = x_refs[0][...]
        for r in x_refs[1:]:
            acc = jnp.maximum(acc, r[...])
    else:
        acc = x_refs[0][...].astype(jnp.float32)           # f32 accumulation (bf16-safe)
        for r in x_refs[1:]:
            acc = acc + r[...].astype(jnp.float32)
        if op == "average":
            acc = acc * (1.0 / num_rels)
    o_ref[...] = acc.astype(o_ref.dtype)


def reduce_aggregate(hs, op):
    shape = hs[0].shape
    xs = [_flatten_2d(h) for h in hs]
    rows, cols = xs[0].shape
    tr = _row_tile(rows, num_bufs=len(hs) + 1, itemsize=xs[0].dtype.itemsize)
    spec = pl.BlockSpec((tr, cols), lambda i: (i, 0))
    out2d = pl.pallas_call(
        functools.partial(_reduce_kernel, op=op, num_rels=len(hs)),
        out_shape=jax.ShapeDtypeStruct((rows, cols), xs[0].dtype),
        grid=(pl.cdiv(rows, tr),),
        in_specs=[spec] * len(hs),
        out_specs=spec,
        compiler_params=_params(),
    )(*xs)
    return _unflatten(out2d, shape)


def _weighted_reduce_kernel(*refs):
    w_ref, x_refs, o_ref = refs[0], refs[1:-1], refs[-1]
    acc = w_ref[0] * x_refs[0][...].astype(jnp.float32)
    for r in range(1, len(x_refs)):
        acc = acc + w_ref[r] * x_refs[r][...].astype(jnp.float32)
    o_ref[...] = acc.astype(o_ref.dtype)


def weighted_sum_aggregate(hs, w):
    shape = hs[0].shape
    xs = [_flatten_2d(h) for h in hs]
    rows, cols = xs[0].shape
    tr = _row_tile(rows, num_bufs=len(hs) + 1, itemsize=xs[0].dtype.itemsize)
    spec = pl.BlockSpec((tr, cols), lambda i: (i, 0))
    out2d = pl.pallas_call(
        _weighted_reduce_kernel,
        out_shape=jax.ShapeDtypeStruct((rows, cols), xs[0].dtype),
        grid=(pl.cdiv(rows, tr),),
        in_specs=[pl.BlockSpec(memory_space=pltpu.MemorySpace.SMEM)] + [spec] * len(hs),
        out_specs=spec,
        compiler_params=_params(),
    )(w.astype(jnp.float32), *xs)
    return _unflatten(out2d, shape)


# ----------------------------------------------------------------------------
# Attention aggregation: R separate (C, M) inputs, M = B*N*L on the lane axis
# ----------------------------------------------------------------------------

def _attention_kernel(*refs, num_rels):
    f32 = jnp.float32
    x_refs = refs[:num_rels]
    w1t_ref, b1_ref, w2t_ref, b2_ref, o_ref = refs[num_rels:]
    w1t = w1t_ref[...]                                     # (H, C)
    b1 = b1_ref[...]                                       # (H, 1)
    w2t = w2t_ref[...]                                     # (1, H)
    b2 = b2_ref[...]                                       # (1, 1)

    # Score pass: both projections on the MXU; only the (1, TM) scores stay live.
    scores = []
    for r in range(num_rels):
        xr = x_refs[r][...].astype(f32)                                        # (C, TM)
        h = jnp.maximum(jnp.dot(w1t, xr, preferred_element_type=f32) + b1, 0.0)
        scores.append(jnp.dot(w2t, h, preferred_element_type=f32) + b2)        # (1, TM)

    m = scores[0]
    for s in scores[1:]:
        m = jnp.maximum(m, s)
    es = [jnp.exp(s - m) for s in scores]
    denom = es[0]
    for e in es[1:]:
        denom = denom + e
    inv = pl.reciprocal(denom, approx=True)                # EUP seed ...
    inv = inv * (2.0 - denom * inv)                        # ... one Newton step for accuracy

    # Accumulate pass: re-read each relation instead of keeping R f32 copies live.
    acc = (es[0] * inv) * x_refs[0][...].astype(f32)
    for r in range(1, num_rels):
        acc = acc + (es[r] * inv) * x_refs[r][...].astype(f32)
    o_ref[...] = acc.astype(o_ref.dtype)


def attention_aggregate(xs_cm, w1, b1, w2, b2):
    R = len(xs_cm)
    C, M = xs_cm[0].shape
    H = w1.shape[1]
    itemsize = xs_cm[0].dtype.itemsize
    per_lane = ((R + 1) * 2 * C * itemsize) + (2 * H * 4)  # blocks + f32 hidden temp
    tm = _lane_tile(M, per_lane, cap=512)
    x_spec = pl.BlockSpec((C, tm), lambda i: (0, i))
    return pl.pallas_call(
        functools.partial(_attention_kernel, num_rels=R),
        out_shape=jax.ShapeDtypeStruct((C, M), xs_cm[0].dtype),
        grid=(pl.cdiv(M, tm),),
        in_specs=[x_spec] * R + [
            pl.BlockSpec((H, C), lambda i: (0, 0)),
            pl.BlockSpec((H, 1), lambda i: (0, 0)),
            pl.BlockSpec((1, H), lambda i: (0, 0)),
            pl.BlockSpec((1, 1), lambda i: (0, 0)),
        ],
        out_specs=pl.BlockSpec((C, tm), lambda i: (0, i)),
        compiler_params=_params(),
    )(*xs_cm, jnp.transpose(w1), b1.reshape(H, 1), jnp.transpose(w2), b2.reshape(1, 1))


# ----------------------------------------------------------------------------
# MLP aggregation (transposed: batch on lanes, lane-dense stores for small OD)
# ----------------------------------------------------------------------------

def _mlp_kernel(x_ref, w1t_ref, b1_ref, w2t_ref, b2_ref, o_ref):
    f32 = jnp.float32
    h = jnp.maximum(jnp.dot(w1t_ref[...], x_ref[...], preferred_element_type=f32)
                    + b1_ref[...], 0.0)                                        # (H, tb)
    o_ref[...] = (jnp.dot(w2t_ref[...], h, preferred_element_type=f32)
                  + b2_ref[...]).astype(o_ref.dtype)                           # (OD, tb)


def mlp_forward(x_t, w1, b1, w2, b2):
    K, B = x_t.shape
    H = w1.shape[1]
    OD = w2.shape[1]
    per_lane = (2 * K + 2 * OD) * x_t.dtype.itemsize + H * 4
    tb = _lane_tile(B, per_lane, cap=1024)
    return pl.pallas_call(
        _mlp_kernel,
        out_shape=jax.ShapeDtypeStruct((OD, B), x_t.dtype),
        grid=(pl.cdiv(B, tb),),
        in_specs=[
            pl.BlockSpec((K, tb), lambda i: (0, i)),
            pl.BlockSpec((H, K), lambda i: (0, 0)),
            pl.BlockSpec((H, 1), lambda i: (0, 0)),
            pl.BlockSpec((OD, H), lambda i: (0, 0)),
            pl.BlockSpec((OD, 1), lambda i: (0, 0)),
        ],
        out_specs=pl.BlockSpec((OD, tb), lambda i: (0, i)),
        compiler_params=_params(),
    )(x_t, jnp.transpose(w1), b1.reshape(H, 1), jnp.transpose(w2), b2.reshape(OD, 1))


# ----------------------------------------------------------------------------
# conv_fusion: Toeplitz-matmul on the MXU + fused channel mean (no pad / transposes)
# ----------------------------------------------------------------------------

def _conv_fusion_kernel(x_ref, w_ref, b_ref, o_ref, *, num_ch, seq_n, batch_tile):
    f32 = jnp.float32
    w = w_ref[...]                          # (R*L, OD*L) Toeplitz conv weights
    bias = b_ref[...]                       # (1, OD*L)
    inv_c = 1.0 / num_ch
    for ib in range(batch_tile):
        xb = x_ref[ib].astype(f32)          # (C*N, R*L) raw torch-view rows for one b
        acc = xb[0:seq_n, :]
        for c in range(1, num_ch):
            acc = acc + xb[c * seq_n:(c + 1) * seq_n, :]
        xm = acc * inv_c                    # channel mean (commutes with the linear conv)
        y = jnp.dot(xm, w, preferred_element_type=f32) + bias          # (N, OD*L) on MXU
        o_ref[ib] = y.astype(o_ref.dtype)


def conv_fusion_aggregate(ho, conv_w, conv_b):
    B, C, N, L = ho[0].shape
    R = len(ho)
    OD, _, K = conv_w.shape
    pad = K // 2

    # torch: stack(dim=2).view(B*C*N, R, L) is a raw row-major reinterpretation of the
    # contiguous (B, C, R, N, L) tensor -> identical to this reshape (stack is required).
    x3 = jnp.stack(ho, axis=2).reshape(B, C * N, R * L)

    # Toeplitz form of Conv1d(R -> OD, K, padding=K//2):
    # W[r*L + j, o*L + l] = conv_w[o, r, j - l + pad] when that tap is in range, else 0.
    jj = jnp.arange(L)[:, None]
    ll = jnp.arange(L)[None, :]
    kk = jj - ll + pad
    valid = (kk >= 0) & (kk < K)
    taps = jnp.where(valid[None, None], conv_w[:, :, jnp.clip(kk, 0, K - 1)], 0.0)  # (OD,R,L,L)
    w_big = taps.transpose(1, 2, 0, 3).reshape(R * L, OD * L).astype(jnp.float32)
    b_big = jnp.repeat(conv_b, L).reshape(1, OD * L).astype(jnp.float32)

    tb = _batch_tile(B)
    out = pl.pallas_call(
        functools.partial(_conv_fusion_kernel, num_ch=C, seq_n=N, batch_tile=tb),
        out_shape=jax.ShapeDtypeStruct((B, N, OD * L), ho[0].dtype),
        grid=(B // tb,),
        in_specs=[
            pl.BlockSpec((tb, C * N, R * L), lambda i: (i, 0, 0)),
            pl.BlockSpec((R * L, OD * L), lambda i: (0, 0)),
            pl.BlockSpec((1, OD * L), lambda i: (0, 0)),
        ],
        out_specs=pl.BlockSpec((tb, N, OD * L), lambda i: (i, 0, 0)),
        compiler_params=_params(),
    )(x3, w_big, b_big)

    # torch's .view(B, C, OD, N, L).mean(1): the channel mean is already fused in-kernel;
    # the remaining (n, o, l) -> (o, n, l) scramble is exactly this raw reinterpretation.
    return out.reshape(B, OD, N, L)


# ----------------------------------------------------------------------------
# Module
# ----------------------------------------------------------------------------

class FeatureAggregator:
    """JAX/Pallas port of the PyTorch FeatureAggregator."""

    def __init__(self, method, num_rels, embed_size=None, hidden_dim=None,
                 output_dim=None, kernel_size=3, key=None):
        self.method = method.lower()
        self.num_rels = num_rels
        self.kernel_size = kernel_size
        self.output_dim = output_dim
        if key is None:
            key = jax.random.PRNGKey(0)
        ks = jax.random.split(key, 4)

        if self.method == "weighted_sum":
            self.weights = jnp.ones((num_rels,), jnp.float32)  # torch init: ones
        elif self.method == "attention":
            assert embed_size is not None
            self.att_w1 = 0.1 * jax.random.normal(ks[0], (embed_size, 128), jnp.float32)
            self.att_b1 = 0.1 * jax.random.normal(ks[1], (128,), jnp.float32)
            self.att_w2 = 0.1 * jax.random.normal(ks[2], (128, 1), jnp.float32)
            self.att_b2 = 0.1 * jax.random.normal(ks[3], (1,), jnp.float32)
        elif self.method == "mlp":
            assert hidden_dim is not None and output_dim is not None
            in_f = num_rels * 128  # requires C*N*L == 128 (same constraint as the torch module)
            self.mlp_w1 = 0.1 * jax.random.normal(ks[0], (in_f, hidden_dim), jnp.float32)
            self.mlp_b1 = 0.1 * jax.random.normal(ks[1], (hidden_dim,), jnp.float32)
            self.mlp_w2 = 0.1 * jax.random.normal(ks[2], (hidden_dim, output_dim), jnp.float32)
            self.mlp_b2 = 0.1 * jax.random.normal(ks[3], (output_dim,), jnp.float32)
        elif self.method == "conv_fusion":
            assert output_dim is not None
            # pad = K // 2 reproduces torch Conv1d(padding=K//2) only for odd K.
            assert kernel_size % 2 == 1, "conv_fusion kernel supports odd kernel_size only"
            self.conv_w = 0.1 * jax.random.normal(
                ks[0], (output_dim, num_rels, kernel_size), jnp.float32)
            self.conv_b = 0.1 * jax.random.normal(ks[1], (output_dim,), jnp.float32)
        elif self.method not in ("sum", "average", "max"):
            raise ValueError(f"unsupported aggregation method: {self.method}")

    def __call__(self, ho):
        B, C, N, L = ho[0].shape
        R = self.num_rels
        m = self.method

        if m in ("sum", "average", "max"):
            return reduce_aggregate(ho, m)                  # no XLA stack copy

        if m == "weighted_sum":
            w = jax.nn.softmax(self.weights)
            return weighted_sum_aggregate(ho, w)

        if m == "attention":
            # R separate (C, M) inputs (no stack); element order matches torch's
            # permute(0,3,4,1,2).view(B*N*L, R, C).
            xs = [h.transpose(1, 0, 2, 3).reshape(C, B * N * L) for h in ho]
            out = attention_aggregate(xs, self.att_w1, self.att_b1, self.att_w2, self.att_b2)
            return out.reshape(C, B, N, L).transpose(1, 0, 2, 3)

        if m == "mlp":
            # torch's .view(B, R*C*N*L) interleaves relations -> the stack is required.
            x_t = jnp.stack(ho, axis=1).reshape(B, R * C * N * L).T   # (K, B): batch on lanes
            out_t = mlp_forward(x_t, self.mlp_w1, self.mlp_b1, self.mlp_w2, self.mlp_b2)
            out = out_t.T                                              # (B, OD), tiny transpose
            return jnp.broadcast_to(out[:, :, None, None], (B, out.shape[1], N, L))

        if m == "conv_fusion":
            return conv_fusion_aggregate(ho, self.conv_w, self.conv_b)

        raise ValueError(f"unsupported aggregation method: {m}")


# ----------------------------------------------------------------------------
# Main
# ----------------------------------------------------------------------------

if __name__ == "__main__":
    key = jax.random.PRNGKey(0)
    B, C, N, L = 2, 4, 4, 8          # C*N*L = 128 (required by the module's MLP branch)
    R = 3
    embed_size, hidden_dim, output_dim, ksize = C, 32, 16, 3

    k_in, k_param = jax.random.split(key)
    ho = [jax.random.normal(k, (B, C, N, L), jnp.float32) for k in jax.random.split(k_in, R)]
    stacked0 = jnp.stack(ho, axis=0)

    for method in ["sum", "average", "max", "weighted_sum", "attention", "mlp", "conv_fusion"]:
        agg = FeatureAggregator(method, R, embed_size=embed_size, hidden_dim=hidden_dim,
                                output_dim=output_dim, kernel_size=ksize, key=k_param)
        out = jax.block_until_ready(agg(ho))

        # Plain-JAX reference mirroring the torch forward.
        if method == "sum":
            ref = stacked0.sum(0)
        elif method == "average":
            ref = stacked0.mean(0)
        elif method == "max":
            ref = stacked0.max(0)
        elif method == "weighted_sum":
            w = jax.nn.softmax(agg.weights).reshape(R, 1, 1, 1, 1)
            ref = (stacked0 * w).sum(0)
        elif method == "attention":
            xr = jnp.stack(ho, axis=1).transpose(0, 3, 4, 1, 2).reshape(B * N * L, R, C)
            s = jnp.maximum(xr @ agg.att_w1 + agg.att_b1, 0.0) @ agg.att_w2 + agg.att_b2
            a = jax.nn.softmax(s[..., 0], axis=1)[..., None]
            ref = (xr * a).sum(1).reshape(B, N, L, C).transpose(0, 3, 1, 2)
        elif method == "mlp":
            xr = jnp.stack(ho, axis=1).reshape(B, R * C * N * L)
            h = jnp.maximum(xr @ agg.mlp_w1 + agg.mlp_b1, 0.0)
            o = h @ agg.mlp_w2 + agg.mlp_b2
            ref = jnp.broadcast_to(o[:, :, None, None], (B, output_dim, N, L))
        else:  # conv_fusion
            x = jnp.stack(ho, axis=2).reshape(B * C * N, R, L)
            xp = jnp.pad(x, ((0, 0), (0, 0), (ksize // 2, ksize // 2)))
            co = agg.conv_b.reshape(1, -1, 1) + sum(
                jnp.einsum("or,brl->bol", agg.conv_w[:, :, k], xp[:, :, k:k + L])
                for k in range(ksize))
            ref = co.reshape(B, C, output_dim, N, L).mean(axis=1)

        tol = 1e-3 if method == "attention" else 1e-4   # attention uses approx reciprocal
        np.testing.assert_allclose(np.asarray(out), np.asarray(ref), rtol=tol, atol=tol)

    print("KERNEL_OK")
</pallas_src>

<mosaic_0001>
module attributes {stable_mosaic.version = 11 : i64} {
  func.func @_reduce_kernel(%arg0: i32, %arg1: memref<2x128xf32, #tpu.memory_space<vmem>>, %arg2: memref<2x128xf32, #tpu.memory_space<vmem>>, %arg3: memref<2x128xf32, #tpu.memory_space<vmem>>, %arg4: memref<2x128xf32, #tpu.memory_space<vmem>>) attributes {dimension_semantics = [#tpu.dimension_semantics<parallel>], iteration_bounds = array<i64: 1>, scalar_prefetch = 0 : i64, scratch_operands = 0 : i64, tpu.core_type = #tpu.core_type<tc>, window_params = [{transform_indices = @transform_0, window_bounds = array<i64: 2, 128>}, {transform_indices = @transform_1, window_bounds = array<i64: 2, 128>}, {transform_indices = @transform_2, window_bounds = array<i64: 2, 128>}, {transform_indices = @transform_3, window_bounds = array<i64: 2, 128>}]} {
    %c0 = arith.constant 0 : index
    %c0_0 = arith.constant 0 : index
    %0 = vector.load %arg1[%c0, %c0_0] : memref<2x128xf32, #tpu.memory_space<vmem>>, vector<2x128xf32>
    %c0_1 = arith.constant 0 : index
    %c0_2 = arith.constant 0 : index
    %1 = vector.load %arg2[%c0_1, %c0_2] : memref<2x128xf32, #tpu.memory_space<vmem>>, vector<2x128xf32>
    %2 = arith.addf %0, %1 : vector<2x128xf32>
    %c0_3 = arith.constant 0 : index
    %c0_4 = arith.constant 0 : index
    %3 = vector.load %arg3[%c0_3, %c0_4] : memref<2x128xf32, #tpu.memory_space<vmem>>, vector<2x128xf32>
    %4 = arith.addf %2, %3 : vector<2x128xf32>
    %c0_5 = arith.constant 0 : index
    %c0_6 = arith.constant 0 : index
    %5 = vector.load %arg4[%c0_5, %c0_6] : memref<2x128xf32, #tpu.memory_space<vmem>>, vector<2x128xf32>
    tpu.vector_store %arg4[%c0_5, %c0_6], %4 {strides = array<i32>} : memref<2x128xf32, #tpu.memory_space<vmem>>, vector<2x128xf32>,
    return
  }
  func.func @transform_0(%arg0: i32) -> (i32, i32) {
    %c0_i32 = arith.constant 0 : i32
    %c0_i32_0 = arith.constant 0 : i32
    return %arg0, %c0_i32 : i32, i32
  }
  func.func @transform_1(%arg0: i32) -> (i32, i32) {
    %c0_i32 = arith.constant 0 : i32
    %c0_i32_0 = arith.constant 0 : i32
    return %arg0, %c0_i32 : i32, i32
  }
  func.func @transform_2(%arg0: i32) -> (i32, i32) {
    %c0_i32 = arith.constant 0 : i32
    %c0_i32_0 = arith.constant 0 : i32
    return %arg0, %c0_i32 : i32, i32
  }
  func.func @transform_3(%arg0: i32) -> (i32, i32) {
    %c0_i32 = arith.constant 0 : i32
    %c0_i32_0 = arith.constant 0 : i32
    return %arg0, %c0_i32 : i32, i32
  }
}

</mosaic_0001>

<llo_original>
// kernel: tpu_custom_call.1
$region0: #{tpu_custom_call.1}
  #allocation0 [shape = 'u32[]', space=smem, size = 0x4, offset = 0x4, fixed_abs, tag = 'smem constant byte address 0x4 - core index']
  #allocation1 [shape = 'u32[144,128]{1,0:T(1,128)}', space=vmem, size = 0x12000, scoped, tag = 'internal scratch']
  %s0 = inlined_call_operand.hbm [shape: f32[2,128], index: 0, kind: input, shape index: {}]
  %s1 = inlined_call_operand.vmem [shape: f32[2,128], index: 1, kind: input, shape index: {}]
  %s2 = inlined_call_operand.vmem [shape: f32[2,128], index: 2, kind: input, shape index: {}]
  %s3 = inlined_call_operand.hbm [shape: f32[2,128], index: 3, kind: output, shape index: {}]
  %s4 = sld [smem:[#allocation0]]
  $region26: #{tpu_custom_call.1} parent=0
    _
  %s6 = ssub.s32 1, %s4
  %s7 = scalar_select 0, %s6, %s4
  $region1: #{tpu_custom_call.1} parent=0
    #allocation2 [shape = 'u8[1024]{0}', space=vmem, size = 0x400, scoped, tag = 'input window, operand 0, single buffered']
    #allocation3 [shape = 's32[1]{0}', space=sflag, size = 0x4, scoped, tag = 'scoped memory for tpu_custom_call.1']
    #allocation4 [shape = 's32[1]{0}', space=sflag, size = 0x4, scoped, tag = 'scoped memory for tpu_custom_call.1']
    #allocation5 [shape = 'u8[1024]{0}', space=vmem, size = 0x400, scoped, tag = 'output window, operand 0, single buffered']
    %8 = vsyncpa [#allocation3], 0
    %9 = vsyncpa [#allocation4], 0
    // Predicated region
    $region2: #{tpu_custom_call.1} parent=1 // pred_check
      _
    $region3: #{tpu_custom_call.1} parent=1 // pred_check_branch
      %11 = sbr.rel (0) target = $region5
    $region4: #{tpu_custom_call.1} parent=1 // pred_region
      %s13 = ssub.s32 32, 32
      %14 = vsyncadd [#allocation3], %s13
      %s16 = sshll.u32 [#allocation2], 4
      %s17 = int_to_ptr.vmem [resolvable:$true] %s16
      %19 = dma.hbm_to_vmem [thread:$0]  %s0, 32, %s17, [#allocation3]
    $region5: #{tpu_custom_call.1} parent=1 // pred_fallthru
      _
    // Predicated region
    $region6: #{tpu_custom_call.1} parent=1 // pred_check
      _
    $region7: #{tpu_custom_call.1} parent=1 // pred_check_branch
      %21 = sbr.rel (0) target = $region9
    $region8: #{tpu_custom_call.1} parent=1 // pred_region
      _
    $region9: #{tpu_custom_call.1} parent=1 // pred_fallthru
      _
    // Predicated region
    $region10: #{tpu_custom_call.1} parent=1 // pred_check
      _
    $region11: #{tpu_custom_call.1} parent=1 // pred_check_branch
      %23 = sbr.rel (0) target = $region13
    $region12: #{tpu_custom_call.1} parent=1 // pred_region
      _
    $region13: #{tpu_custom_call.1} parent=1 // pred_fallthru
      _
    // Predicated region
    $region14: #{tpu_custom_call.1} parent=1 // pred_check
      _
    $region15: #{tpu_custom_call.1} parent=1 // pred_check_branch
      %25 = sbr.rel (0) target = $region17
    $region16: #{tpu_custom_call.1} parent=1 // pred_region
      %26 = dma.done [#allocation3], 32
    $region17: #{tpu_custom_call.1} parent=1 // pred_fallthru
      _
    %v27 = vld [vmem:[#allocation2] sm:$0x3]
    %v28 = vld [vmem:[%s1] sm:$0x3]
    %v29 = vadd.f32 %v27, %v28
    %v30 = vld [vmem:[%s2] sm:$0x3]
    %v31 = vadd.f32 %v29, %v30
    %32 = vst [vmem:[#allocation5] sm:$0x3] %v31
    // Predicated region
    $region18: #{tpu_custom_call.1} parent=1 // pred_check
      _
    $region19: #{tpu_custom_call.1} parent=1 // pred_check_branch
      %34 = sbr.rel (0) target = $region21
    $region20: #{tpu_custom_call.1} parent=1 // pred_region
      %s36 = ssub.s32 32, 32
      %37 = vsyncadd [#allocation4], %s36
      %s39 = sshll.u32 [#allocation5], 4
      %s40 = int_to_ptr.vmem [resolvable:$true] %s39
      %42 = dma.vmem_to_hbm [thread:$0]  %s40, 32, %s3, [#allocation4]
    $region21: #{tpu_custom_call.1} parent=1 // pred_fallthru
      _
    // Predicated region
    $region22: #{tpu_custom_call.1} parent=1 // pred_check
      _
    $region23: #{tpu_custom_call.1} parent=1 // pred_check_branch
      %44 = sbr.rel (0) target = $region25
    $region24: #{tpu_custom_call.1} parent=1 // pred_region
      %45 = dma.done [#allocation4], 32
    $region25: #{tpu_custom_call.1} parent=1 // pred_fallthru
      _
    %46 = vsyncpa [#allocation3], 1
    %47 = vsyncpa [#allocation4], 1

</llo_original>
